<compile_context>
chip_gen: v6e
topology: v6e:2x2x1
jax: 0.10.0
libtpu: 0.0.40
codegen_flags: <defaults>
</compile_context>

<pallas_src>
import jax
import jax.numpy as jnp
from jax.experimental import pallas as pl
from jax.experimental.pallas import tpu as pltpu


def _decoder_kernel(
    x_ref,      # (S*B, I)  seq-major flattened input (row k*B + b)
    h0_ref,     # (B, H)    initial hidden state
    wih_ref,    # (I, H)    input->hidden weight (pre-transposed)
    whh_ref,    # (H, H)    hidden->hidden weight (pre-transposed)
    b_ref,      # (1, H)    b_ih + b_hh (pre-folded)
    wff_ref,    # (H, O)    linear-head weight (pre-transposed)
    bff_ref,    # (1, O)
    out_ref,    # (S*B, O)  seq-major flattened output
    hid_ref,    # (S*B, H)  f32 scratch: hidden states for all timesteps
):
    B, H = h0_ref.shape
    S = x_ref.shape[0] // B

    # Batched input projection for ALL timesteps at once (off the serial path):
    #   xproj[k*B:(k+1)*B] = x_k @ W_ih^T + (b_ih + b_hh)
    xproj = (
        jnp.dot(x_ref[...], wih_ref[...], preferred_element_type=jnp.float32)
        + b_ref[...]
    )

    # Serial recurrence: only one small MXU matmul per step on the critical path.
    whh = whh_ref[...]
    h = h0_ref[...].astype(jnp.float32)
    for k in range(S):  # S is small & static -> full unroll at trace time
        pre = xproj[k * B:(k + 1) * B, :] + jnp.dot(
            h, whh, preferred_element_type=jnp.float32
        )
        h = jnp.tanh(pre)
        hid_ref[k * B:(k + 1) * B, :] = h

    # Linear head hoisted out of the loop: one batched matmul + one slab store.
    out = (
        jnp.dot(hid_ref[...], wff_ref[...], preferred_element_type=jnp.float32)
        + bff_ref[...]
    )
    out_ref[...] = out.astype(out_ref.dtype)


def decoder_forward(x, h0, w_ih, w_hh, b_ih, b_hh, w_ff, b_ff):
    """x: (batch, seq_len, input_size) -> (batch, seq_len, output_size)."""
    B, S, I = x.shape
    H = w_ih.shape[0]
    O = w_ff.shape[0]

    # seq-major flattened layout: row k*B + b  <->  (timestep k, batch b)
    x_flat = jnp.transpose(x, (1, 0, 2)).reshape(S * B, I).astype(jnp.float32)
    wih_t = w_ih.T.astype(jnp.float32)                    # (I, H)
    whh_t = w_hh.T.astype(jnp.float32)                    # (H, H)
    wff_t = w_ff.T.astype(jnp.float32)                    # (H, O)
    b_comb = (b_ih + b_hh).reshape(1, H).astype(jnp.float32)
    bff2 = b_ff.reshape(1, O).astype(jnp.float32)
    h0f = h0.astype(jnp.float32)

    out_flat = pl.pallas_call(
        _decoder_kernel,
        out_shape=jax.ShapeDtypeStruct((S * B, O), jnp.float32),
        scratch_shapes=[pltpu.VMEM((S * B, H), jnp.float32)],
    )(x_flat, h0f, wih_t, whh_t, b_comb, wff_t, bff2)

    return jnp.transpose(out_flat.reshape(S, B, O), (1, 0, 2))   # (B, S, O)


def _reference_forward(x, h0, w_ih, w_hh, b_ih, b_hh, w_ff, b_ff):
    """Pure-JAX reference (mirrors the PyTorch loop) for a sanity check."""
    B, S, _ = x.shape
    hs = []
    h = h0
    for k in range(S):
        h = jnp.tanh(x[:, k, :] @ w_ih.T + b_ih + h @ w_hh.T + b_hh)
        hs.append(h)
    hidden = jnp.stack(hs, axis=1)                               # (B, S, H)
    return hidden @ w_ff.T + b_ff                                # (B, S, O)


if __name__ == "__main__":
    # Small shapes consistent with the module's forward signature.
    batch, seq_len = 2, 8
    input_size, hidden_size, output_size = 4, 32, 16

    key = jax.random.PRNGKey(0)
    kx, kh0, k1, k2, k3, k4, k5, k6 = jax.random.split(key, 8)

    x = jax.random.normal(kx, (batch, seq_len, input_size), dtype=jnp.float32)
    # PyTorch forward draws h_x = torch.randn(batch, hidden); drawn here deterministically.
    h0 = jax.random.normal(kh0, (batch, hidden_size), dtype=jnp.float32)

    # Deterministic parameter init (shapes match nn.RNNCell / nn.Linear).
    s_rnn = 1.0 / jnp.sqrt(hidden_size)
    s_ff = 1.0 / jnp.sqrt(hidden_size)
    w_ih = jax.random.uniform(k1, (hidden_size, input_size), minval=-s_rnn, maxval=s_rnn)
    w_hh = jax.random.uniform(k2, (hidden_size, hidden_size), minval=-s_rnn, maxval=s_rnn)
    b_ih = jax.random.uniform(k3, (hidden_size,), minval=-s_rnn, maxval=s_rnn)
    b_hh = jax.random.uniform(k4, (hidden_size,), minval=-s_rnn, maxval=s_rnn)
    w_ff = jax.random.uniform(k5, (output_size, hidden_size), minval=-s_ff, maxval=s_ff)
    b_ff = jax.random.uniform(k6, (output_size,), minval=-s_ff, maxval=s_ff)

    out = decoder_forward(x, h0, w_ih, w_hh, b_ih, b_hh, w_ff, b_ff)
    out = jax.block_until_ready(out)

    ref = _reference_forward(x, h0, w_ih, w_hh, b_ih, b_hh, w_ff, b_ff)
    assert out.shape == (batch, seq_len, output_size)
    assert jnp.allclose(out, ref, atol=1e-4, rtol=1e-4), "mismatch vs reference"

    print("KERNEL_OK")
</pallas_src>

<mosaic_0001>
module attributes {stable_mosaic.version = 11 : i64} {
  func.func @_decoder_kernel(%arg0: memref<16x4xf32, #tpu.memory_space<vmem>>, %arg1: memref<2x32xf32, #tpu.memory_space<vmem>>, %arg2: memref<4x32xf32, #tpu.memory_space<vmem>>, %arg3: memref<32x32xf32, #tpu.memory_space<vmem>>, %arg4: memref<1x32xf32, #tpu.memory_space<vmem>>, %arg5: memref<32x16xf32, #tpu.memory_space<vmem>>, %arg6: memref<1x16xf32, #tpu.memory_space<vmem>>, %arg7: memref<16x16xf32, #tpu.memory_space<vmem>>, %arg8: memref<16x32xf32, #tpu.memory_space<vmem>>) attributes {dimension_semantics = [], scalar_prefetch = 0 : i64, scratch_operands = 1 : i64, tpu.core_type = #tpu.core_type<tc>} {
    %c0 = arith.constant 0 : index
    %c0_0 = arith.constant 0 : index
    %0 = vector.load %arg0[%c0, %c0_0] : memref<16x4xf32, #tpu.memory_space<vmem>>, vector<16x4xf32>
    %c0_1 = arith.constant 0 : index
    %c0_2 = arith.constant 0 : index
    %1 = vector.load %arg2[%c0_1, %c0_2] : memref<4x32xf32, #tpu.memory_space<vmem>>, vector<4x32xf32>
    %cst = arith.constant dense<0.000000e+00> : vector<16x32xf32>
    %2 = tpu.matmul %0, %1, %cst {dimension_numbers = #tpu.dot_dimension_numbers<[1], [0], [0], [1], [0, 0, 1, 1], [], []>} : vector<16x4xf32>, vector<4x32xf32>, vector<16x32xf32> -> vector<16x32xf32>
    %c0_3 = arith.constant 0 : index
    %c0_4 = arith.constant 0 : index
    %3 = vector.load %arg4[%c0_3, %c0_4] : memref<1x32xf32, #tpu.memory_space<vmem>>, vector<1x32xf32>
    %4 = vector.broadcast %3 : vector<1x32xf32> to vector<16x32xf32>
    %5 = arith.addf %2, %4 : vector<16x32xf32>
    %c0_5 = arith.constant 0 : index
    %c0_6 = arith.constant 0 : index
    %6 = vector.load %arg3[%c0_5, %c0_6] : memref<32x32xf32, #tpu.memory_space<vmem>>, vector<32x32xf32>
    %c0_7 = arith.constant 0 : index
    %c0_8 = arith.constant 0 : index
    %7 = vector.load %arg1[%c0_7, %c0_8] : memref<2x32xf32, #tpu.memory_space<vmem>>, vector<2x32xf32>
    %8 = vector.extract_strided_slice %5 {offsets = [0, 0], sizes = [2, 32], strides = [1, 1]} : vector<16x32xf32> to vector<2x32xf32>
    %cst_9 = arith.constant dense<0.000000e+00> : vector<2x32xf32>
    %9 = tpu.matmul %7, %6, %cst_9 {dimension_numbers = #tpu.dot_dimension_numbers<[1], [0], [0], [1], [0, 0, 1, 1], [], []>} : vector<2x32xf32>, vector<32x32xf32>, vector<2x32xf32> -> vector<2x32xf32>
    %10 = arith.addf %8, %9 : vector<2x32xf32>
    %11 = math.tanh %10 : vector<2x32xf32>
    %c0_10 = arith.constant 0 : index
    %c0_11 = arith.constant 0 : index
    %12 = vector.load %arg8[%c0_10, %c0_11] : memref<16x32xf32, #tpu.memory_space<vmem>>, vector<2x32xf32>
    tpu.vector_store %arg8[%c0_10, %c0_11], %11 {strides = array<i32>} : memref<16x32xf32, #tpu.memory_space<vmem>>, vector<2x32xf32>,
    %13 = vector.extract_strided_slice %5 {offsets = [2, 0], sizes = [2, 32], strides = [1, 1]} : vector<16x32xf32> to vector<2x32xf32>
    %cst_12 = arith.constant dense<0.000000e+00> : vector<2x32xf32>
    %14 = tpu.matmul %11, %6, %cst_12 {dimension_numbers = #tpu.dot_dimension_numbers<[1], [0], [0], [1], [0, 0, 1, 1], [], []>} : vector<2x32xf32>, vector<32x32xf32>, vector<2x32xf32> -> vector<2x32xf32>
    %15 = arith.addf %13, %14 : vector<2x32xf32>
    %16 = math.tanh %15 : vector<2x32xf32>
    %c2 = arith.constant 2 : index
    %c0_13 = arith.constant 0 : index
    %17 = vector.load %arg8[%c2, %c0_13] : memref<16x32xf32, #tpu.memory_space<vmem>>, vector<2x32xf32>
    tpu.vector_store %arg8[%c2, %c0_13], %16 {strides = array<i32>} : memref<16x32xf32, #tpu.memory_space<vmem>>, vector<2x32xf32>,
    %18 = vector.extract_strided_slice %5 {offsets = [4, 0], sizes = [2, 32], strides = [1, 1]} : vector<16x32xf32> to vector<2x32xf32>
    %cst_14 = arith.constant dense<0.000000e+00> : vector<2x32xf32>
    %19 = tpu.matmul %16, %6, %cst_14 {dimension_numbers = #tpu.dot_dimension_numbers<[1], [0], [0], [1], [0, 0, 1, 1], [], []>} : vector<2x32xf32>, vector<32x32xf32>, vector<2x32xf32> -> vector<2x32xf32>
    %20 = arith.addf %18, %19 : vector<2x32xf32>
    %21 = math.tanh %20 : vector<2x32xf32>
    %c4 = arith.constant 4 : index
    %c0_15 = arith.constant 0 : index
    %22 = vector.load %arg8[%c4, %c0_15] : memref<16x32xf32, #tpu.memory_space<vmem>>, vector<2x32xf32>
    tpu.vector_store %arg8[%c4, %c0_15], %21 {strides = array<i32>} : memref<16x32xf32, #tpu.memory_space<vmem>>, vector<2x32xf32>,
    %23 = vector.extract_strided_slice %5 {offsets = [6, 0], sizes = [2, 32], strides = [1, 1]} : vector<16x32xf32> to vector<2x32xf32>
    %cst_16 = arith.constant dense<0.000000e+00> : vector<2x32xf32>
    %24 = tpu.matmul %21, %6, %cst_16 {dimension_numbers = #tpu.dot_dimension_numbers<[1], [0], [0], [1], [0, 0, 1, 1], [], []>} : vector<2x32xf32>, vector<32x32xf32>, vector<2x32xf32> -> vector<2x32xf32>
    %25 = arith.addf %23, %24 : vector<2x32xf32>
    %26 = math.tanh %25 : vector<2x32xf32>
    %c6 = arith.constant 6 : index
    %c0_17 = arith.constant 0 : index
    %27 = vector.load %arg8[%c6, %c0_17] : memref<16x32xf32, #tpu.memory_space<vmem>>, vector<2x32xf32>
    tpu.vector_store %arg8[%c6, %c0_17], %26 {strides = array<i32>} : memref<16x32xf32, #tpu.memory_space<vmem>>, vector<2x32xf32>,
    %28 = vector.extract_strided_slice %5 {offsets = [8, 0], sizes = [2, 32], strides = [1, 1]} : vector<16x32xf32> to vector<2x32xf32>
    %cst_18 = arith.constant dense<0.000000e+00> : vector<2x32xf32>
    %29 = tpu.matmul %26, %6, %cst_18 {dimension_numbers = #tpu.dot_dimension_numbers<[1], [0], [0], [1], [0, 0, 1, 1], [], []>} : vector<2x32xf32>, vector<32x32xf32>, vector<2x32xf32> -> vector<2x32xf32>
    %30 = arith.addf %28, %29 : vector<2x32xf32>
    %31 = math.tanh %30 : vector<2x32xf32>
    %c8 = arith.constant 8 : index
    %c0_19 = arith.constant 0 : index
    %32 = vector.load %arg8[%c8, %c0_19] : memref<16x32xf32, #tpu.memory_space<vmem>>, vector<2x32xf32>
    tpu.vector_store %arg8[%c8, %c0_19], %31 {strides = array<i32>} : memref<16x32xf32, #tpu.memory_space<vmem>>, vector<2x32xf32>,
    %33 = vector.extract_strided_slice %5 {offsets = [10, 0], sizes = [2, 32], strides = [1, 1]} : vector<16x32xf32> to vector<2x32xf32>
    %cst_20 = arith.constant dense<0.000000e+00> : vector<2x32xf32>
    %34 = tpu.matmul %31, %6, %cst_20 {dimension_numbers = #tpu.dot_dimension_numbers<[1], [0], [0], [1], [0, 0, 1, 1], [], []>} : vector<2x32xf32>, vector<32x32xf32>, vector<2x32xf32> -> vector<2x32xf32>
    %35 = arith.addf %33, %34 : vector<2x32xf32>
    %36 = math.tanh %35 : vector<2x32xf32>
    %c10 = arith.constant 10 : index
    %c0_21 = arith.constant 0 : index
    %37 = vector.load %arg8[%c10, %c0_21] : memref<16x32xf32, #tpu.memory_space<vmem>>, vector<2x32xf32>
    tpu.vector_store %arg8[%c10, %c0_21], %36 {strides = array<i32>} : memref<16x32xf32, #tpu.memory_space<vmem>>, vector<2x32xf32>,
    %38 = vector.extract_strided_slice %5 {offsets = [12, 0], sizes = [2, 32], strides = [1, 1]} : vector<16x32xf32> to vector<2x32xf32>
    %cst_22 = arith.constant dense<0.000000e+00> : vector<2x32xf32>
    %39 = tpu.matmul %36, %6, %cst_22 {dimension_numbers = #tpu.dot_dimension_numbers<[1], [0], [0], [1], [0, 0, 1, 1], [], []>} : vector<2x32xf32>, vector<32x32xf32>, vector<2x32xf32> -> vector<2x32xf32>
    %40 = arith.addf %38, %39 : vector<2x32xf32>
    %41 = math.tanh %40 : vector<2x32xf32>
    %c12 = arith.constant 12 : index
    %c0_23 = arith.constant 0 : index
    %42 = vector.load %arg8[%c12, %c0_23] : memref<16x32xf32, #tpu.memory_space<vmem>>, vector<2x32xf32>
    tpu.vector_store %arg8[%c12, %c0_23], %41 {strides = array<i32>} : memref<16x32xf32, #tpu.memory_space<vmem>>, vector<2x32xf32>,
    %43 = vector.extract_strided_slice %5 {offsets = [14, 0], sizes = [2, 32], strides = [1, 1]} : vector<16x32xf32> to vector<2x32xf32>
    %cst_24 = arith.constant dense<0.000000e+00> : vector<2x32xf32>
    %44 = tpu.matmul %41, %6, %cst_24 {dimension_numbers = #tpu.dot_dimension_numbers<[1], [0], [0], [1], [0, 0, 1, 1], [], []>} : vector<2x32xf32>, vector<32x32xf32>, vector<2x32xf32> -> vector<2x32xf32>
    %45 = arith.addf %43, %44 : vector<2x32xf32>
    %46 = math.tanh %45 : vector<2x32xf32>
    %c14 = arith.constant 14 : index
    %c0_25 = arith.constant 0 : index
    %47 = vector.load %arg8[%c14, %c0_25] : memref<16x32xf32, #tpu.memory_space<vmem>>, vector<2x32xf32>
    tpu.vector_store %arg8[%c14, %c0_25], %46 {strides = array<i32>} : memref<16x32xf32, #tpu.memory_space<vmem>>, vector<2x32xf32>,
    %c0_26 = arith.constant 0 : index
    %c0_27 = arith.constant 0 : index
    %48 = vector.load %arg8[%c0_26, %c0_27] : memref<16x32xf32, #tpu.memory_space<vmem>>, vector<16x32xf32>
    %c0_28 = arith.constant 0 : index
    %c0_29 = arith.constant 0 : index
    %49 = vector.load %arg5[%c0_28, %c0_29] : memref<32x16xf32, #tpu.memory_space<vmem>>, vector<32x16xf32>
    %cst_30 = arith.constant dense<0.000000e+00> : vector<16x16xf32>
    %50 = tpu.matmul %48, %49, %cst_30 {dimension_numbers = #tpu.dot_dimension_numbers<[1], [0], [0], [1], [0, 0, 1, 1], [], []>} : vector<16x32xf32>, vector<32x16xf32>, vector<16x16xf32> -> vector<16x16xf32>
    %c0_31 = arith.constant 0 : index
    %c0_32 = arith.constant 0 : index
    %51 = vector.load %arg6[%c0_31, %c0_32] : memref<1x16xf32, #tpu.memory_space<vmem>>, vector<1x16xf32>
    %52 = vector.broadcast %51 : vector<1x16xf32> to vector<16x16xf32>
    %53 = arith.addf %50, %52 : vector<16x16xf32>
    %c0_33 = arith.constant 0 : index
    %c0_34 = arith.constant 0 : index
    %54 = vector.load %arg7[%c0_33, %c0_34] : memref<16x16xf32, #tpu.memory_space<vmem>>, vector<16x16xf32>
    tpu.vector_store %arg7[%c0_33, %c0_34], %53 {strides = array<i32>} : memref<16x16xf32, #tpu.memory_space<vmem>>, vector<16x16xf32>,
    return
  }
}

</mosaic_0001>

<llo_original>
// kernel: tpu_custom_call.1
$region0: #{tpu_custom_call.1}
  #allocation0 [shape = 'u32[]', space=smem, size = 0x4, offset = 0x4, fixed_abs, tag = 'smem constant byte address 0x4 - core index']
  #allocation1 [shape = 'u32[144,128]{1,0:T(1,128)}', space=vmem, size = 0x12000, scoped, tag = 'internal scratch']
  #allocation2 [shape = 'f32[16,32]{1,0:T(8,128)}', space=vmem, size = 0x2000, scoped, tag = 'scratch operand']
  %s0 = inlined_call_operand.vmem [shape: f32[16,4], index: 0, kind: input, shape index: {}]
  %s1 = inlined_call_operand.vmem [shape: f32[2,32], index: 1, kind: input, shape index: {}]
  %s2 = inlined_call_operand.vmem [shape: f32[4,32], index: 2, kind: input, shape index: {}]
  %s3 = inlined_call_operand.vmem [shape: f32[32,32], index: 3, kind: input, shape index: {}]
  %s4 = inlined_call_operand.vmem [shape: f32[1,32], index: 4, kind: input, shape index: {}]
  %s5 = inlined_call_operand.vmem [shape: f32[32,16], index: 5, kind: input, shape index: {}]
  %s6 = inlined_call_operand.vmem [shape: f32[1,16], index: 6, kind: input, shape index: {}]
  %s7 = inlined_call_operand.hbm [shape: f32[16,16], index: 7, kind: output, shape index: {}]
  %s8 = sld [smem:[#allocation0]]
  $region38: #{tpu_custom_call.1} parent=0
    _
  %s10 = ssub.s32 1, %s8
  %s11 = scalar_select 0, %s10, %s8
  $region1: #{tpu_custom_call.1} parent=0
    #allocation3 [shape = 'u8[8192]{0}', space=vmem, size = 0x2000, scoped, tag = 'output window, operand 0, single buffered']
    #allocation4 [shape = 's32[1]{0}', space=sflag, size = 0x4, scoped, tag = 'scoped memory for tpu_custom_call.1']
    %12 = vsyncpa [#allocation4], 0
    // Predicated region
    $region2: #{tpu_custom_call.1} parent=1 // pred_check
      _
    $region3: #{tpu_custom_call.1} parent=1 // pred_check_branch
      %14 = sbr.rel (0) target = $region5
    $region4: #{tpu_custom_call.1} parent=1 // pred_region
      _
    $region5: #{tpu_custom_call.1} parent=1 // pred_fallthru
      _
    // Predicated region
    $region6: #{tpu_custom_call.1} parent=1 // pred_check
      _
    $region7: #{tpu_custom_call.1} parent=1 // pred_check_branch
      %16 = sbr.rel (0) target = $region9
    $region8: #{tpu_custom_call.1} parent=1 // pred_region
      _
    $region9: #{tpu_custom_call.1} parent=1 // pred_fallthru
      _
    // Predicated region
    $region10: #{tpu_custom_call.1} parent=1 // pred_check
      _
    $region11: #{tpu_custom_call.1} parent=1 // pred_check_branch
      %18 = sbr.rel (0) target = $region13
    $region12: #{tpu_custom_call.1} parent=1 // pred_region
      _
    $region13: #{tpu_custom_call.1} parent=1 // pred_fallthru
      _
    // Predicated region
    $region14: #{tpu_custom_call.1} parent=1 // pred_check
      _
    $region15: #{tpu_custom_call.1} parent=1 // pred_check_branch
      %20 = sbr.rel (0) target = $region17
    $region16: #{tpu_custom_call.1} parent=1 // pred_region
      _
    $region17: #{tpu_custom_call.1} parent=1 // pred_fallthru
      _
    // Predicated region
    $region18: #{tpu_custom_call.1} parent=1 // pred_check
      _
    $region19: #{tpu_custom_call.1} parent=1 // pred_check_branch
      %22 = sbr.rel (0) target = $region21
    $region20: #{tpu_custom_call.1} parent=1 // pred_region
      _
    $region21: #{tpu_custom_call.1} parent=1 // pred_fallthru
      _
    // Predicated region
    $region22: #{tpu_custom_call.1} parent=1 // pred_check
      _
    $region23: #{tpu_custom_call.1} parent=1 // pred_check_branch
      %24 = sbr.rel (0) target = $region25
    $region24: #{tpu_custom_call.1} parent=1 // pred_region
      _
    $region25: #{tpu_custom_call.1} parent=1 // pred_fallthru
      _
    // Predicated region
    $region26: #{tpu_custom_call.1} parent=1 // pred_check
      _
    $region27: #{tpu_custom_call.1} parent=1 // pred_check_branch
      %26 = sbr.rel (0) target = $region29
    $region28: #{tpu_custom_call.1} parent=1 // pred_region
      _
    $region29: #{tpu_custom_call.1} parent=1 // pred_fallthru
      _
    %v27 = vld [vmem:[%s0] sm:$0xff]
    %v28 = vld [vmem:[%s0 + $0x8] sm:$0xff]
    %v29 = vld [vmem:[%s2] sm:$0xf]
    %v30 = vld [vmem:[%s4] sm:$0x1]
    %v32 = vlaneseq
    %v33 = vshrl.u32 %v32, 7
    %v34 = vsub.s32 0, %v33
    %v35 = vrot.slane %v30, %v34
    %vm37 = vcmask 31744
    %v39 = vsel %vm37, %v27, 0
    %v42 = vsel %vm37, %v28, 0
    %vm44 = vcmask 1043456
    %v46 = vsel %vm44, %v29, 0
    %48 = vmatprep.subr.mxu0 0.0
    %49 = vmatpush1.msra.mxu0 0.0
    %50 = vmatprep.subr.mxu0 0.0
    %51 = vmatpush1.msra.mxu0 0.0
    %52 = vmatprep.subr.mxu0 0.0
    %53 = vmatpush1.msra.mxu0 0.0
    %54 = vmatprep.subr.mxu0 0.0
    %55 = vmatpush1.msra.mxu0 0.0
    %56 = vmatprep.subr.mxu0 0.0
    %57 = vmatpush1.msra.mxu0 0.0
    %58 = vmatprep.subr.mxu0 0.0
    %59 = vmatpush1.msra.mxu0 0.0
    %60 = vmatprep.subr.mxu0 0.0
    %61 = vmatpush1.msra.mxu0 0.0
    %62 = vmatprep.subr.mxu0 0.0
    %63 = vmatpush1.msra.mxu0 0.0
    %64 = vmatprep.subr.mxu0 0.0
    %65 = vmatpush1.msra.mxu0 0.0
    %66 = vmatprep.subr.mxu0 0.0
    %67 = vmatpush1.msra.mxu0 0.0
    %68 = vmatprep.subr.mxu0 0.0
    %69 = vmatpush1.msra.mxu0 0.0
    %70 = vmatprep.subr.mxu0 0.0
    %71 = vmatpush1.msra.mxu0 0.0
    %72 = vmatprep.subr.mxu0 0.0
    %73 = vmatpush1.msra.mxu0 0.0
    %74 = vmatprep.subr.mxu0 0.0
    %75 = vmatpush1.msra.mxu0 0.0
    %76 = vmatprep.subr.mxu0 0.0
    %77 = vmatpush1.msra.mxu0 0.0
    %78 = vmatprep.subr.mxu0 0.0
    %79 = vmatpush1.msra.mxu0 %v46
    %80 = vmatprep.subr.mxu0 0.0
    %81 = vmatpush2.msra.mxu0 0.0
    %82 = vmatprep.subr.mxu0 0.0
    %83 = vmatpush2.msra.mxu0 0.0
    %84 = vmatprep.subr.mxu0 0.0
    %85 = vmatpush2.msra.mxu0 0.0
    %86 = vmatprep.subr.mxu0 0.0
    %87 = vmatpush2.msra.mxu0 0.0
    %88 = vmatprep.subr.mxu0 0.0
    %89 = vmatpush2.msra.mxu0 0.0
    %90 = vmatprep.subr.mxu0 0.0
    %91 = vmatpush2.msra.mxu0 0.0
    %92 = vmatprep.subr.mxu0 0.0
    %93 = vmatpush2.msra.mxu0 0.0
    %94 = vmatprep.subr.mxu0 0.0
    %95 = vmatpush2.msra.mxu0 0.0
    %96 = vmatprep.subr.mxu0 0.0
    %97 = vmatpush2.msra.mxu0 0.0
    %98 = vmatprep.subr.mxu0 0.0
    %99 = vmatpush2.msra.mxu0 0.0
    %100 = vmatprep.subr.mxu0 0.0
    %101 = vmatpush2.msra.mxu0 0.0
    %102 = vmatprep.subr.mxu0 0.0
    %103 = vmatpush2.msra.mxu0 0.0
    %104 = vmatprep.subr.mxu0 0.0
    %105 = vmatpush2.msra.mxu0 0.0
    %106 = vmatprep.subr.mxu0 0.0
    %107 = vmatpush2.msra.mxu0 0.0
    %108 = vmatprep.subr.mxu0 0.0
    %109 = vmatpush2.msra.mxu0 0.0
    %110 = vmatprep.subr.mxu0 0.0
    %111 = vmatpush2.msra.mxu0 0.0
    %112 = vmatprep.mubr.f32.mxu0 0.0
    %113 = vmatmul.mubr.f32.gmra.mxu0 %v39
    %v114 = vpop.f32.mrf.mxu0
    %v115 = vadd.f32 %v35, %v114
    %v116 = vpop.f32.mrf.mxu0
    %117 = vmatprep.mubr.f32.mxu0 0.0
    %118 = vmatmul.mubr.f32.gmra.mxu0 %v42
    %v119 = vpop.f32.mrf.mxu0
    %v120 = vadd.f32 %v35, %v119
    %v121 = vpop.f32.mrf.mxu0
    %122 = vdwg.mxu0
    %v123 = vld [vmem:[%s3] sm:$0xff]
    %v124 = vld [vmem:[%s3 + $0x8] sm:$0xff]
    %v125 = vld [vmem:[%s3 + $0x10] sm:$0xff]
    %v126 = vld [vmem:[%s3 + $0x18] sm:$0xff]
    %v127 = vld [vmem:[%s1] sm:$0x3]
    %vm128 = vcmask 261120
    %v130 = vsel %vm128, %v127, 0
    %132 = vmatprep.subr.mxu0 0.0
    %133 = vmatpush1.msra.mxu0 0.0
    %134 = vmatprep.subr.mxu0 0.0
    %135 = vmatpush1.msra.mxu0 0.0
    %136 = vmatprep.subr.mxu0 0.0
    %137 = vmatpush1.msra.mxu0 0.0
    %138 = vmatprep.subr.mxu0 0.0
    %139 = vmatpush1.msra.mxu0 0.0
    %140 = vmatprep.subr.mxu0 0.0
    %141 = vmatpush1.msra.mxu0 0.0
    %142 = vmatprep.subr.mxu0 0.0
    %143 = vmatpush1.msra.mxu0 0.0
    %144 = vmatprep.subr.mxu0 0.0
    %145 = vmatpush1.msra.mxu0 0.0
    %146 = vmatprep.subr.mxu0 0.0
    %147 = vmatpush1.msra.mxu0 0.0
    %148 = vmatprep.subr.mxu0 0.0
    %149 = vmatpush1.msra.mxu0 0.0
    %150 = vmatprep.subr.mxu0 0.0
    %151 = vmatpush1.msra.mxu0 0.0
    %152 = vmatprep.subr.mxu0 0.0
    %153 = vmatpush1.msra.mxu0 0.0
    %154 = vmatprep.subr.mxu0 0.0
    %155 = vmatpush1.msra.mxu0 0.0
    %156 = vmatprep.subr.mxu0 0.0
    %157 = vmatpush1.msra.mxu0 %v126
    %158 = vmatprep.subr.mxu0 0.0
    %159 = vmatpush1.msra.mxu0 %v125
    %160 = vmatprep.subr.mxu0 0.0
    %161 = vmatpush1.msra.mxu0 %v124
    %162 = vmatprep.subr.mxu0 0.0
    %163 = vmatpush1.msra.mxu0 %v123
    %164 = vmatprep.subr.mxu0 0.0
    %165 = vmatpush2.msra.mxu0 0.0
    %166 = vmatprep.subr.mxu0 0.0
    %167 = vmatpush2.msra.mxu0 0.0
    %168 = vmatprep.subr.mxu0 0.0
    %169 = vmatpush2.msra.mxu0 0.0
    %170 = vmatprep.subr.mxu0 0.0
    %171 = vmatpush2.msra.mxu0 0.0
    %172 = vmatprep.subr.mxu0 0.0
    %173 = vmatpush2.msra.mxu0 0.0
    %174 = vmatprep.subr.mxu0 0.0
    %175 = vmatpush2.msra.mxu0 0.0
    %176 = vmatprep.subr.mxu0 0.0
    %177 = vmatpush2.msra.mxu0 0.0
    %178 = vmatprep.subr.mxu0 0.0
    %179 = vmatpush2.msra.mxu0 0.0
    %180 = vmatprep.subr.mxu0 0.0
    %181 = vmatpush2.msra.mxu0 0.0
    %182 = vmatprep.subr.mxu0 0.0
    %183 = vmatpush2.msra.mxu0 0.0
    %184 = vmatprep.subr.mxu0 0.0
    %185 = vmatpush2.msra.mxu0 0.0
    %186 = vmatprep.subr.mxu0 0.0
    %187 = vmatpush2.msra.mxu0 0.0
    %188 = vmatprep.subr.mxu0 0.0
    %189 = vmatpush2.msra.mxu0 0.0
    %190 = vmatprep.subr.mxu0 0.0
    %191 = vmatpush2.msra.mxu0 0.0
    %192 = vmatprep.subr.mxu0 0.0
    %193 = vmatpush2.msra.mxu0 0.0
    %194 = vmatprep.subr.mxu0 0.0
    %195 = vmatpush2.msra.mxu0 0.0
    %196 = vmatprep.mubr.f32.mxu0 0.0
    %197 = vmatmul.mubr.f32.gmra.mxu0 %v130
    %v198 = vpop.f32.mrf.mxu0
    %v199 = vadd.f32 0.0, %v198
    %v200 = vpop.f32.mrf.mxu0
    %201 = vdwg.mxu0
    %v202 = vadd.f32 %v115, %v199
    %v203 = vtanh.pop %v202
    %vm204 = vcmask 254976
    %205 = vst.msk [vmem:[#allocation2] sm:$0x3] %vm204, %v203
    %v207 = vsel %vm128, %v203, 0
    %209 = vmatprep.subr.mxu0 0.0
    %210 = vmatpush1.msra.mxu0 0.0
    %211 = vmatprep.subr.mxu0 0.0
    %212 = vmatpush1.msra.mxu0 0.0
    %213 = vmatprep.subr.mxu0 0.0
    %214 = vmatpush1.msra.mxu0 0.0
    %215 = vmatprep.subr.mxu0 0.0
    %216 = vmatpush1.msra.mxu0 0.0
    %217 = vmatprep.subr.mxu0 0.0
    %218 = vmatpush1.msra.mxu0 0.0
    %219 = vmatprep.subr.mxu0 0.0
    %220 = vmatpush1.msra.mxu0 0.0
    %221 = vmatprep.subr.mxu0 0.0
    %222 = vmatpush1.msra.mxu0 0.0
    %223 = vmatprep.subr.mxu0 0.0
    %224 = vmatpush1.msra.mxu0 0.0
    %225 = vmatprep.subr.mxu0 0.0
    %226 = vmatpush1.msra.mxu0 0.0
    %227 = vmatprep.subr.mxu0 0.0
    %228 = vmatpush1.msra.mxu0 0.0
    %229 = vmatprep.subr.mxu0 0.0
    %230 = vmatpush1.msra.mxu0 0.0
    %231 = vmatprep.subr.mxu0 0.0
    %232 = vmatpush1.msra.mxu0 0.0
    %233 = vmatprep.subr.mxu0 0.0
    %234 = vmatpush1.msra.mxu0 %v126
    %235 = vmatprep.subr.mxu0 0.0
    %236 = vmatpush1.msra.mxu0 %v125
    %237 = vmatprep.subr.mxu0 0.0
    %238 = vmatpush1.msra.mxu0 %v124
    %239 = vmatprep.subr.mxu0 0.0
    %240 = vmatpush1.msra.mxu0 %v123
    %241 = vmatprep.subr.mxu0 0.0
    %242 = vmatpush2.msra.mxu0 0.0
    %243 = vmatprep.subr.mxu0 0.0
    %244 = vmatpush2.msra.mxu0 0.0
    %245 = vmatprep.subr.mxu0 0.0
    %246 = vmatpush2.msra.mxu0 0.0
    %247 = vmatprep.subr.mxu0 0.0
    %248 = vmatpush2.msra.mxu0 0.0
    %249 = vmatprep.subr.mxu0 0.0
    %250 = vmatpush2.msra.mxu0 0.0
    %251 = vmatprep.subr.mxu0 0.0
    %252 = vmatpush2.msra.mxu0 0.0
    %253 = vmatprep.subr.mxu0 0.0
    %254 = vmatpush2.msra.mxu0 0.0
    %255 = vmatprep.subr.mxu0 0.0
    %256 = vmatpush2.msra.mxu0 0.0
    %257 = vmatprep.subr.mxu0 0.0
    %258 = vmatpush2.msra.mxu0 0.0
    %259 = vmatprep.subr.mxu0 0.0
    %260 = vmatpush2.msra.mxu0 0.0
    %261 = vmatprep.subr.mxu0 0.0
    %262 = vmatpush2.msra.mxu0 0.0
    %263 = vmatprep.subr.mxu0 0.0
    %264 = vmatpush2.msra.mxu0 0.0
    %265 = vmatprep.subr.mxu0 0.0
    %266 = vmatpush2.msra.mxu0 0.0
    %267 = vmatprep.subr.mxu0 0.0
    %268 = vmatpush2.msra.mxu0 0.0
    %269 = vmatprep.subr.mxu0 0.0
    %270 = vmatpush2.msra.mxu0 0.0
    %271 = vmatprep.subr.mxu0 0.0
    %272 = vmatpush2.msra.mxu0 0.0
    %273 = vmatprep.mubr.f32.mxu0 0.0
    %274 = vmatmul.mubr.f32.gmra.mxu0 %v207
    %v275 = vpop.f32.mrf.mxu0
    %v276 = vadd.f32 0.0, %v275
    %v277 = vpop.f32.mrf.mxu0
    %278 = vdwg.mxu0
    %v280 = vrot.slane %v276, 6
    %v282 = vadd.f32 %v115, %v280
    %v283 = vtanh.pop %v282
    %vm284 = vcmask 257026
    %285 = vst.msk [vmem:[#allocation2] sm:$0xc] %vm284, %v283
    %v287 = vrot.slane %v283, 2
    %v288 = vsel %vm128, %v287, 0
    %290 = vmatprep.subr.mxu0 0.0
    %291 = vmatpush1.msra.mxu0 0.0
    %292 = vmatprep.subr.mxu0 0.0
    %293 = vmatpush1.msra.mxu0 0.0
    %294 = vmatprep.subr.mxu0 0.0
    %295 = vmatpush1.msra.mxu0 0.0
    %296 = vmatprep.subr.mxu0 0.0
    %297 = vmatpush1.msra.mxu0 0.0
    %298 = vmatprep.subr.mxu0 0.0
    %299 = vmatpush1.msra.mxu0 0.0
    %300 = vmatprep.subr.mxu0 0.0
    %301 = vmatpush1.msra.mxu0 0.0
    %302 = vmatprep.subr.mxu0 0.0
    %303 = vmatpush1.msra.mxu0 0.0
    %304 = vmatprep.subr.mxu0 0.0
    %305 = vmatpush1.msra.mxu0 0.0
    %306 = vmatprep.subr.mxu0 0.0
    %307 = vmatpush1.msra.mxu0 0.0
    %308 = vmatprep.subr.mxu0 0.0
    %309 = vmatpush1.msra.mxu0 0.0
    %310 = vmatprep.subr.mxu0 0.0
    %311 = vmatpush1.msra.mxu0 0.0
    %312 = vmatprep.subr.mxu0 0.0
    %313 = vmatpush1.msra.mxu0 0.0
    %314 = vmatprep.subr.mxu0 0.0
    %315 = vmatpush1.msra.mxu0 %v126
    %316 = vmatprep.subr.mxu0 0.0
    %317 = vmatpush1.msra.mxu0 %v125
    %318 = vmatprep.subr.mxu0 0.0
    %319 = vmatpush1.msra.mxu0 %v124
    %320 = vmatprep.subr.mxu0 0.0
    %321 = vmatpush1.msra.mxu0 %v123
    %322 = vmatprep.subr.mxu0 0.0
    %323 = vmatpush2.msra.mxu0 0.0
    %324 = vmatprep.subr.mxu0 0.0
    %325 = vmatpush2.msra.mxu0 0.0
    %326 = vmatprep.subr.mxu0 0.0
    %327 = vmatpush2.msra.mxu0 0.0
    %328 = vmatprep.subr.mxu0 0.0
    %329 = vmatpush2.msra.mxu0 0.0
    %330 = vmatprep.subr.mxu0 0.0
    %331 = vmatpush2.msra.mxu0 0.0
    %332 = vmatprep.subr.mxu0 0.0
    %333 = vmatpush2.msra.mxu0 0.0
    %334 = vmatprep.subr.mxu0 0.0
    %335 = vmatpush2.msra.mxu0 0.0
    %336 = vmatprep.subr.mxu0 0.0
    %337 = vmatpush2.msra.mxu0 0.0
    %338 = vmatprep.subr.mxu0 0.0
    %339 = vmatpush2.msra.mxu0 0.0
    %340 = vmatprep.subr.mxu0 0.0
    %341 = vmatpush2.msra.mxu0 0.0
    %342 = vmatprep.subr.mxu0 0.0
    %343 = vmatpush2.msra.mxu0 0.0
    %344 = vmatprep.subr.mxu0 0.0
    %345 = vmatpush2.msra.mxu0 0.0
    %346 = vmatprep.subr.mxu0 0.0
    %347 = vmatpush2.msra.mxu0 0.0
    %348 = vmatprep.subr.mxu0 0.0
    %349 = vmatpush2.msra.mxu0 0.0
    %350 = vmatprep.subr.mxu0 0.0
    %351 = vmatpush2.msra.mxu0 0.0
    %352 = vmatprep.subr.mxu0 0.0
    %353 = vmatpush2.msra.mxu0 0.0
    %354 = vmatprep.mubr.f32.mxu0 0.0
    %355 = vmatmul.mubr.f32.gmra.mxu0 %v288
    %v356 = vpop.f32.mrf.mxu0
    %v357 = vadd.f32 0.0, %v356
    %v358 = vpop.f32.mrf.mxu0
    %359 = vdwg.mxu0
    %v361 = vrot.slane %v357, 4
    %v363 = vadd.f32 %v115, %v361
    %v364 = vtanh.pop %v363
    %vm365 = vcmask 259076
    %366 = vst.msk [vmem:[#allocation2] sm:$0x30] %vm365, %v364
    %v368 = vrot.slane %v364, 4
    %v369 = vsel %vm128, %v368, 0
    %371 = vmatprep.subr.mxu0 0.0
    %372 = vmatpush1.msra.mxu0 0.0
    %373 = vmatprep.subr.mxu0 0.0
    %374 = vmatpush1.msra.mxu0 0.0
    %375 = vmatprep.subr.mxu0 0.0
    %376 = vmatpush1.msra.mxu0 0.0
    %377 = vmatprep.subr.mxu0 0.0
    %378 = vmatpush1.msra.mxu0 0.0
    %379 = vmatprep.subr.mxu0 0.0
    %380 = vmatpush1.msra.mxu0 0.0
    %381 = vmatprep.subr.mxu0 0.0
    %382 = vmatpush1.msra.mxu0 0.0
    %383 = vmatprep.subr.mxu0 0.0
    %384 = vmatpush1.msra.mxu0 0.0
    %385 = vmatprep.subr.mxu0 0.0
    %386 = vmatpush1.msra.mxu0 0.0
    %387 = vmatprep.subr.mxu0 0.0
    %388 = vmatpush1.msra.mxu0 0.0
    %389 = vmatprep.subr.mxu0 0.0
    %390 = vmatpush1.msra.mxu0 0.0
    %391 = vmatprep.subr.mxu0 0.0
    %392 = vmatpush1.msra.mxu0 0.0
    %393 = vmatprep.subr.mxu0 0.0
    %394 = vmatpush1.msra.mxu0 0.0
    %395 = vmatprep.subr.mxu0 0.0
    %396 = vmatpush1.msra.mxu0 %v126
    %397 = vmatprep.subr.mxu0 0.0
    %398 = vmatpush1.msra.mxu0 %v125
    %399 = vmatprep.subr.mxu0 0.0
    %400 = vmatpush1.msra.mxu0 %v124
    %401 = vmatprep.subr.mxu0 0.0
    %402 = vmatpush1.msra.mxu0 %v123
    %403 = vmatprep.subr.mxu0 0.0
    %404 = vmatpush2.msra.mxu0 0.0
    %405 = vmatprep.subr.mxu0 0.0
    %406 = vmatpush2.msra.mxu0 0.0
    %407 = vmatprep.subr.mxu0 0.0
    %408 = vmatpush2.msra.mxu0 0.0
    %409 = vmatprep.subr.mxu0 0.0
    %410 = vmatpush2.msra.mxu0 0.0
    %411 = vmatprep.subr.mxu0 0.0
    %412 = vmatpush2.msra.mxu0 0.0
    %413 = vmatprep.subr.mxu0 0.0
    %414 = vmatpush2.msra.mxu0 0.0
    %415 = vmatprep.subr.mxu0 0.0
    %416 = vmatpush2.msra.mxu0 0.0
    %417 = vmatprep.subr.mxu0 0.0
    %418 = vmatpush2.msra.mxu0 0.0
    %419 = vmatprep.subr.mxu0 0.0
    %420 = vmatpush2.msra.mxu0 0.0
    %421 = vmatprep.subr.mxu0 0.0
    %422 = vmatpush2.msra.mxu0 0.0
    %423 = vmatprep.subr.mxu0 0.0
    %424 = vmatpush2.msra.mxu0 0.0
    %425 = vmatprep.subr.mxu0 0.0
    %426 = vmatpush2.msra.mxu0 0.0
    %427 = vmatprep.subr.mxu0 0.0
    %428 = vmatpush2.msra.mxu0 0.0
    %429 = vmatprep.subr.mxu0 0.0
    %430 = vmatpush2.msra.mxu0 0.0
    %431 = vmatprep.subr.mxu0 0.0
    %432 = vmatpush2.msra.mxu0 0.0
    %433 = vmatprep.subr.mxu0 0.0
    %434 = vmatpush2.msra.mxu0 0.0
    %435 = vmatprep.mubr.f32.mxu0 0.0
    %436 = vmatmul.mubr.f32.gmra.mxu0 %v369
    %v437 = vpop.f32.mrf.mxu0
    %v438 = vadd.f32 0.0, %v437
    %v439 = vpop.f32.mrf.mxu0
    %440 = vdwg.mxu0
    %v442 = vrot.slane %v438, 2
    %v444 = vadd.f32 %v115, %v442
    %v445 = vtanh.pop %v444
    %vm446 = vcmask 261126
    %447 = vst.msk [vmem:[#allocation2] sm:$0xc0] %vm446, %v445
    %v449 = vrot.slane %v445, 6
    %v450 = vsel %vm128, %v449, 0
    %452 = vmatprep.subr.mxu0 0.0
    %453 = vmatpush1.msra.mxu0 0.0
    %454 = vmatprep.subr.mxu0 0.0
    %455 = vmatpush1.msra.mxu0 0.0
    %456 = vmatprep.subr.mxu0 0.0
    %457 = vmatpush1.msra.mxu0 0.0
    %458 = vmatprep.subr.mxu0 0.0
    %459 = vmatpush1.msra.mxu0 0.0
    %460 = vmatprep.subr.mxu0 0.0
    %461 = vmatpush1.msra.mxu0 0.0
    %462 = vmatprep.subr.mxu0 0.0
    %463 = vmatpush1.msra.mxu0 0.0
    %464 = vmatprep.subr.mxu0 0.0
    %465 = vmatpush1.msra.mxu0 0.0
    %466 = vmatprep.subr.mxu0 0.0
    %467 = vmatpush1.msra.mxu0 0.0
    %468 = vmatprep.subr.mxu0 0.0
    %469 = vmatpush1.msra.mxu0 0.0
    %470 = vmatprep.subr.mxu0 0.0
    %471 = vmatpush1.msra.mxu0 0.0
    %472 = vmatprep.subr.mxu0 0.0
    %473 = vmatpush1.msra.mxu0 0.0
    %474 = vmatprep.subr.mxu0 0.0
    %475 = vmatpush1.msra.mxu0 0.0
    %476 = vmatprep.subr.mxu0 0.0
    %477 = vmatpush1.msra.mxu0 %v126
    %478 = vmatprep.subr.mxu0 0.0
    %479 = vmatpush1.msra.mxu0 %v125
    %480 = vmatprep.subr.mxu0 0.0
    %481 = vmatpush1.msra.mxu0 %v124
    %482 = vmatprep.subr.mxu0 0.0
    %483 = vmatpush1.msra.mxu0 %v123
    %484 = vmatprep.subr.mxu0 0.0
    %485 = vmatpush2.msra.mxu0 0.0
    %486 = vmatprep.subr.mxu0 0.0
    %487 = vmatpush2.msra.mxu0 0.0
    %488 = vmatprep.subr.mxu0 0.0
    %489 = vmatpush2.msra.mxu0 0.0
    %490 = vmatprep.subr.mxu0 0.0
    %491 = vmatpush2.msra.mxu0 0.0
    %492 = vmatprep.subr.mxu0 0.0
    %493 = vmatpush2.msra.mxu0 0.0
    %494 = vmatprep.subr.mxu0 0.0
    %495 = vmatpush2.msra.mxu0 0.0
    %496 = vmatprep.subr.mxu0 0.0
    %497 = vmatpush2.msra.mxu0 0.0
    %498 = vmatprep.subr.mxu0 0.0
    %499 = vmatpush2.msra.mxu0 0.0
    %500 = vmatprep.subr.mxu0 0.0
    %501 = vmatpush2.msra.mxu0 0.0
    %502 = vmatprep.subr.mxu0 0.0
    %503 = vmatpush2.msra.mxu0 0.0
    %504 = vmatprep.subr.mxu0 0.0
    %505 = vmatpush2.msra.mxu0 0.0
    %506 = vmatprep.subr.mxu0 0.0
    %507 = vmatpush2.msra.mxu0 0.0
    %508 = vmatprep.subr.mxu0 0.0
    %509 = vmatpush2.msra.mxu0 0.0
    %510 = vmatprep.subr.mxu0 0.0
    %511 = vmatpush2.msra.mxu0 0.0
    %512 = vmatprep.subr.mxu0 0.0
    %513 = vmatpush2.msra.mxu0 0.0
    %514 = vmatprep.subr.mxu0 0.0
    %515 = vmatpush2.msra.mxu0 0.0
    %516 = vmatprep.mubr.f32.mxu0 0.0
    %517 = vmatmul.mubr.f32.gmra.mxu0 %v450
    %v518 = vpop.f32.mrf.mxu0
    %v519 = vadd.f32 0.0, %v518
    %v520 = vpop.f32.mrf.mxu0
    %521 = vdwg.mxu0
    %v522 = vadd.f32 %v120, %v519
    %v523 = vtanh.pop %v522
    %524 = vst.msk [vmem:[#allocation2 + $0x8] sm:$0x3] %vm204, %v523
    %v526 = vsel %vm128, %v523, 0
    %528 = vmatprep.subr.mxu0 0.0
    %529 = vmatpush1.msra.mxu0 0.0
    %530 = vmatprep.subr.mxu0 0.0
    %531 = vmatpush1.msra.mxu0 0.0
    %532 = vmatprep.subr.mxu0 0.0
    %533 = vmatpush1.msra.mxu0 0.0
    %534 = vmatprep.subr.mxu0 0.0
    %535 = vmatpush1.msra.mxu0 0.0
    %536 = vmatprep.subr.mxu0 0.0
    %537 = vmatpush1.msra.mxu0 0.0
    %538 = vmatprep.subr.mxu0 0.0
    %539 = vmatpush1.msra.mxu0 0.0
    %540 = vmatprep.subr.mxu0 0.0
    %541 = vmatpush1.msra.mxu0 0.0
    %542 = vmatprep.subr.mxu0 0.0
    %543 = vmatpush1.msra.mxu0 0.0
    %544 = vmatprep.subr.mxu0 0.0
    %545 = vmatpush1.msra.mxu0 0.0
    %546 = vmatprep.subr.mxu0 0.0
    %547 = vmatpush1.msra.mxu0 0.0
    %548 = vmatprep.subr.mxu0 0.0
    %549 = vmatpush1.msra.mxu0 0.0
    %550 = vmatprep.subr.mxu0 0.0
    %551 = vmatpush1.msra.mxu0 0.0
    %552 = vmatprep.subr.mxu0 0.0
    %553 = vmatpush1.msra.mxu0 %v126
    %554 = vmatprep.subr.mxu0 0.0
    %555 = vmatpush1.msra.mxu0 %v125
    %556 = vmatprep.subr.mxu0 0.0
    %557 = vmatpush1.msra.mxu0 %v124
    %558 = vmatprep.subr.mxu0 0.0
    %559 = vmatpush1.msra.mxu0 %v123
    %560 = vmatprep.subr.mxu0 0.0
    %561 = vmatpush2.msra.mxu0 0.0
    %562 = vmatprep.subr.mxu0 0.0
    %563 = vmatpush2.msra.mxu0 0.0
    %564 = vmatprep.subr.mxu0 0.0
    %565 = vmatpush2.msra.mxu0 0.0
    %566 = vmatprep.subr.mxu0 0.0
    %567 = vmatpush2.msra.mxu0 0.0
    %568 = vmatprep.subr.mxu0 0.0
    %569 = vmatpush2.msra.mxu0 0.0
    %570 = vmatprep.subr.mxu0 0.0
    %571 = vmatpush2.msra.mxu0 0.0
    %572 = vmatprep.subr.mxu0 0.0
    %573 = vmatpush2.msra.mxu0 0.0
    %574 = vmatprep.subr.mxu0 0.0
    %575 = vmatpush2.msra.mxu0 0.0
    %576 = vmatprep.subr.mxu0 0.0
    %577 = vmatpush2.msra.mxu0 0.0
    %578 = vmatprep.subr.mxu0 0.0
    %579 = vmatpush2.msra.mxu0 0.0
    %580 = vmatprep.subr.mxu0 0.0
    %581 = vmatpush2.msra.mxu0 0.0
    %582 = vmatprep.subr.mxu0 0.0
    %583 = vmatpush2.msra.mxu0 0.0
    %584 = vmatprep.subr.mxu0 0.0
    %585 = vmatpush2.msra.mxu0 0.0
    %586 = vmatprep.subr.mxu0 0.0
    %587 = vmatpush2.msra.mxu0 0.0
    %588 = vmatprep.subr.mxu0 0.0
    %589 = vmatpush2.msra.mxu0 0.0
    %590 = vmatprep.subr.mxu0 0.0
    %591 = vmatpush2.msra.mxu0 0.0
    %592 = vmatprep.mubr.f32.mxu0 0.0
    %593 = vmatmul.mubr.f32.gmra.mxu0 %v526
    %v594 = vpop.f32.mrf.mxu0
    %v595 = vadd.f32 0.0, %v594
    %v596 = vpop.f32.mrf.mxu0
    %597 = vdwg.mxu0
    %v599 = vrot.slane %v595, 6
    %v601 = vadd.f32 %v120, %v599
    %v602 = vtanh.pop %v601
    %603 = vst.msk [vmem:[#allocation2 + $0x8] sm:$0xc] %vm284, %v602
    %v605 = vrot.slane %v602, 2
    %v606 = vsel %vm128, %v605, 0
    %608 = vmatprep.subr.mxu0 0.0
    %609 = vmatpush1.msra.mxu0 0.0
    %610 = vmatprep.subr.mxu0 0.0
    %611 = vmatpush1.msra.mxu0 0.0
    %612 = vmatprep.subr.mxu0 0.0
    %613 = vmatpush1.msra.mxu0 0.0
    %614 = vmatprep.subr.mxu0 0.0
    %615 = vmatpush1.msra.mxu0 0.0
    %616 = vmatprep.subr.mxu0 0.0
    %617 = vmatpush1.msra.mxu0 0.0
    %618 = vmatprep.subr.mxu0 0.0
    %619 = vmatpush1.msra.mxu0 0.0
    %620 = vmatprep.subr.mxu0 0.0
    %621 = vmatpush1.msra.mxu0 0.0
    %622 = vmatprep.subr.mxu0 0.0
    %623 = vmatpush1.msra.mxu0 0.0
    %624 = vmatprep.subr.mxu0 0.0
    %625 = vmatpush1.msra.mxu0 0.0
    %626 = vmatprep.subr.mxu0 0.0
    %627 = vmatpush1.msra.mxu0 0.0
    %628 = vmatprep.subr.mxu0 0.0
    %629 = vmatpush1.msra.mxu0 0.0
    %630 = vmatprep.subr.mxu0 0.0
    %631 = vmatpush1.msra.mxu0 0.0
    %632 = vmatprep.subr.mxu0 0.0
    %633 = vmatpush1.msra.mxu0 %v126
    %634 = vmatprep.subr.mxu0 0.0
    %635 = vmatpush1.msra.mxu0 %v125
    %636 = vmatprep.subr.mxu0 0.0
    %637 = vmatpush1.msra.mxu0 %v124
    %638 = vmatprep.subr.mxu0 0.0
    %639 = vmatpush1.msra.mxu0 %v123
    %640 = vmatprep.subr.mxu0 0.0
    %641 = vmatpush2.msra.mxu0 0.0
    %642 = vmatprep.subr.mxu0 0.0
    %643 = vmatpush2.msra.mxu0 0.0
    %644 = vmatprep.subr.mxu0 0.0
    %645 = vmatpush2.msra.mxu0 0.0
    %646 = vmatprep.subr.mxu0 0.0
    %647 = vmatpush2.msra.mxu0 0.0
    %648 = vmatprep.subr.mxu0 0.0
    %649 = vmatpush2.msra.mxu0 0.0
    %650 = vmatprep.subr.mxu0 0.0
    %651 = vmatpush2.msra.mxu0 0.0
    %652 = vmatprep.subr.mxu0 0.0
    %653 = vmatpush2.msra.mxu0 0.0
    %654 = vmatprep.subr.mxu0 0.0
    %655 = vmatpush2.msra.mxu0 0.0
    %656 = vmatprep.subr.mxu0 0.0
    %657 = vmatpush2.msra.mxu0 0.0
    %658 = vmatprep.subr.mxu0 0.0
    %659 = vmatpush2.msra.mxu0 0.0
    %660 = vmatprep.subr.mxu0 0.0
    %661 = vmatpush2.msra.mxu0 0.0
    %662 = vmatprep.subr.mxu0 0.0
    %663 = vmatpush2.msra.mxu0 0.0
    %664 = vmatprep.subr.mxu0 0.0
    %665 = vmatpush2.msra.mxu0 0.0
    %666 = vmatprep.subr.mxu0 0.0
    %667 = vmatpush2.msra.mxu0 0.0
    %668 = vmatprep.subr.mxu0 0.0
    %669 = vmatpush2.msra.mxu0 0.0
    %670 = vmatprep.subr.mxu0 0.0
    %671 = vmatpush2.msra.mxu0 0.0
    %672 = vmatprep.mubr.f32.mxu0 0.0
    %673 = vmatmul.mubr.f32.gmra.mxu0 %v606
    %v674 = vpop.f32.mrf.mxu0
    %v675 = vadd.f32 0.0, %v674
    %v676 = vpop.f32.mrf.mxu0
    %677 = vdwg.mxu0
    %v679 = vrot.slane %v675, 4
    %v681 = vadd.f32 %v120, %v679
    %v682 = vtanh.pop %v681
    %683 = vst.msk [vmem:[#allocation2 + $0x8] sm:$0x30] %vm365, %v682
    %v685 = vrot.slane %v682, 4
    %v686 = vsel %vm128, %v685, 0
    %688 = vmatprep.subr.mxu0 0.0
    %689 = vmatpush1.msra.mxu0 0.0
    %690 = vmatprep.subr.mxu0 0.0
    %691 = vmatpush1.msra.mxu0 0.0
    %692 = vmatprep.subr.mxu0 0.0
    %693 = vmatpush1.msra.mxu0 0.0
    %694 = vmatprep.subr.mxu0 0.0
    %695 = vmatpush1.msra.mxu0 0.0
    %696 = vmatprep.subr.mxu0 0.0
    %697 = vmatpush1.msra.mxu0 0.0
    %698 = vmatprep.subr.mxu0 0.0
    %699 = vmatpush1.msra.mxu0 0.0
    %700 = vmatprep.subr.mxu0 0.0
    %701 = vmatpush1.msra.mxu0 0.0
    %702 = vmatprep.subr.mxu0 0.0
    %703 = vmatpush1.msra.mxu0 0.0
    %704 = vmatprep.subr.mxu0 0.0
    %705 = vmatpush1.msra.mxu0 0.0
    %706 = vmatprep.subr.mxu0 0.0
    %707 = vmatpush1.msra.mxu0 0.0
    %708 = vmatprep.subr.mxu0 0.0
    %709 = vmatpush1.msra.mxu0 0.0
    %710 = vmatprep.subr.mxu0 0.0
    %711 = vmatpush1.msra.mxu0 0.0
    %712 = vmatprep.subr.mxu0 0.0
    %713 = vmatpush1.msra.mxu0 %v126
    %714 = vmatprep.subr.mxu0 0.0
    %715 = vmatpush1.msra.mxu0 %v125
    %716 = vmatprep.subr.mxu0 0.0
    %717 = vmatpush1.msra.mxu0 %v124
    %718 = vmatprep.subr.mxu0 0.0
    %719 = vmatpush1.msra.mxu0 %v123
    %720 = vmatprep.subr.mxu0 0.0
    %721 = vmatpush2.msra.mxu0 0.0
    %722 = vmatprep.subr.mxu0 0.0
    %723 = vmatpush2.msra.mxu0 0.0
    %724 = vmatprep.subr.mxu0 0.0
    %725 = vmatpush2.msra.mxu0 0.0
    %726 = vmatprep.subr.mxu0 0.0
    %727 = vmatpush2.msra.mxu0 0.0
    %728 = vmatprep.subr.mxu0 0.0
    %729 = vmatpush2.msra.mxu0 0.0
    %730 = vmatprep.subr.mxu0 0.0
    %731 = vmatpush2.msra.mxu0 0.0
    %732 = vmatprep.subr.mxu0 0.0
    %733 = vmatpush2.msra.mxu0 0.0
    %734 = vmatprep.subr.mxu0 0.0
    %735 = vmatpush2.msra.mxu0 0.0
    %736 = vmatprep.subr.mxu0 0.0
    %737 = vmatpush2.msra.mxu0 0.0
    %738 = vmatprep.subr.mxu0 0.0
    %739 = vmatpush2.msra.mxu0 0.0
    %740 = vmatprep.subr.mxu0 0.0
    %741 = vmatpush2.msra.mxu0 0.0
    %742 = vmatprep.subr.mxu0 0.0
    %743 = vmatpush2.msra.mxu0 0.0
    %744 = vmatprep.subr.mxu0 0.0
    %745 = vmatpush2.msra.mxu0 0.0
    %746 = vmatprep.subr.mxu0 0.0
    %747 = vmatpush2.msra.mxu0 0.0
    %748 = vmatprep.subr.mxu0 0.0
    %749 = vmatpush2.msra.mxu0 0.0
    %750 = vmatprep.subr.mxu0 0.0
    %751 = vmatpush2.msra.mxu0 0.0
    %752 = vmatprep.mubr.f32.mxu0 0.0
    %753 = vmatmul.mubr.f32.gmra.mxu0 %v686
    %v754 = vpop.f32.mrf.mxu0
    %v755 = vadd.f32 0.0, %v754
    %v756 = vpop.f32.mrf.mxu0
    %757 = vdwg.mxu0
    %v759 = vrot.slane %v755, 2
    %v761 = vadd.f32 %v120, %v759
    %v762 = vtanh.pop %v761
    %763 = vst.msk [vmem:[#allocation2 + $0x8] sm:$0xc0] %vm446, %v762
    %v764 = vld [vmem:[#allocation2] sm:$0xff]
    %v765 = vld [vmem:[#allocation2 + $0x8] sm:$0xff]
    %v766 = vld [vmem:[%s5] sm:$0xff]
    %v767 = vld [vmem:[%s5 + $0x8] sm:$0xff]
    %v768 = vld [vmem:[%s5 + $0x10] sm:$0xff]
    %v769 = vld [vmem:[%s5 + $0x18] sm:$0xff]
    %v770 = vld [vmem:[%s6] sm:$0x1]
    %v772 = vlaneseq
    %v773 = vshrl.u32 %v772, 7
    %v774 = vsub.s32 0, %v773
    %v775 = vrot.slane %v770, %v774
    %v778 = vsel %vm128, %v764, 0
    %v781 = vsel %vm128, %v765, 0
    %783 = vmatprep.subr.mxu0 0.0
    %784 = vmatpush1.msra.mxu0 0.0
    %785 = vmatprep.subr.mxu0 0.0
    %786 = vmatpush1.msra.mxu0 0.0
    %787 = vmatprep.subr.mxu0 0.0
    %788 = vmatpush1.msra.mxu0 0.0
    %789 = vmatprep.subr.mxu0 0.0
    %790 = vmatpush1.msra.mxu0 0.0
    %791 = vmatprep.subr.mxu0 0.0
    %792 = vmatpush1.msra.mxu0 0.0
    %793 = vmatprep.subr.mxu0 0.0
    %794 = vmatpush1.msra.mxu0 0.0
    %795 = vmatprep.subr.mxu0 0.0
    %796 = vmatpush1.msra.mxu0 0.0
    %797 = vmatprep.subr.mxu0 0.0
    %798 = vmatpush1.msra.mxu0 0.0
    %799 = vmatprep.subr.mxu0 0.0
    %800 = vmatpush1.msra.mxu0 0.0
    %801 = vmatprep.subr.mxu0 0.0
    %802 = vmatpush1.msra.mxu0 0.0
    %803 = vmatprep.subr.mxu0 0.0
    %804 = vmatpush1.msra.mxu0 0.0
    %805 = vmatprep.subr.mxu0 0.0
    %806 = vmatpush1.msra.mxu0 0.0
    %807 = vmatprep.subr.mxu0 0.0
    %808 = vmatpush1.msra.mxu0 %v769
    %809 = vmatprep.subr.mxu0 0.0
    %810 = vmatpush1.msra.mxu0 %v768
    %811 = vmatprep.subr.mxu0 0.0
    %812 = vmatpush1.msra.mxu0 %v767
    %813 = vmatprep.subr.mxu0 0.0
    %814 = vmatpush1.msra.mxu0 %v766
    %815 = vmatprep.subr.mxu0 0.0
    %816 = vmatpush2.msra.mxu0 0.0
    %817 = vmatprep.subr.mxu0 0.0
    %818 = vmatpush2.msra.mxu0 0.0
    %819 = vmatprep.subr.mxu0 0.0
    %820 = vmatpush2.msra.mxu0 0.0
    %821 = vmatprep.subr.mxu0 0.0
    %822 = vmatpush2.msra.mxu0 0.0
    %823 = vmatprep.subr.mxu0 0.0
    %824 = vmatpush2.msra.mxu0 0.0
    %825 = vmatprep.subr.mxu0 0.0
    %826 = vmatpush2.msra.mxu0 0.0
    %827 = vmatprep.subr.mxu0 0.0
    %828 = vmatpush2.msra.mxu0 0.0
    %829 = vmatprep.subr.mxu0 0.0
    %830 = vmatpush2.msra.mxu0 0.0
    %831 = vmatprep.subr.mxu0 0.0
    %832 = vmatpush2.msra.mxu0 0.0
    %833 = vmatprep.subr.mxu0 0.0
    %834 = vmatpush2.msra.mxu0 0.0
    %835 = vmatprep.subr.mxu0 0.0
    %836 = vmatpush2.msra.mxu0 0.0
    %837 = vmatprep.subr.mxu0 0.0
    %838 = vmatpush2.msra.mxu0 0.0
    %839 = vmatprep.subr.mxu0 0.0
    %840 = vmatpush2.msra.mxu0 0.0
    %841 = vmatprep.subr.mxu0 0.0
    %842 = vmatpush2.msra.mxu0 0.0
    %843 = vmatprep.subr.mxu0 0.0
    %844 = vmatpush2.msra.mxu0 0.0
    %845 = vmatprep.subr.mxu0 0.0
    %846 = vmatpush2.msra.mxu0 0.0
    %847 = vmatprep.mubr.f32.mxu0 0.0
    %848 = vmatmul.mubr.f32.gmra.mxu0 %v778
    %v849 = vpop.f32.mrf.mxu0
    %v850 = vadd.f32 %v775, %v849
    %v851 = vpop.f32.mrf.mxu0
    %852 = vmatprep.mubr.f32.mxu0 0.0
    %853 = vmatmul.mubr.f32.gmra.mxu0 %v781
    %v854 = vpop.f32.mrf.mxu0
    %v855 = vadd.f32 %v775, %v854
    %v856 = vpop.f32.mrf.mxu0
    %857 = vdwg.mxu0
    %vm858 = vcmask 130048
    %859 = vst.msk [vmem:[#allocation3] sm:$0xff] %vm858, %v850
    %860 = vst.msk [vmem:[#allocation3 + $0x8] sm:$0xff] %vm858, %v855
    // Predicated region
    $region30: #{tpu_custom_call.1} parent=1 // pred_check
      _
    $region31: #{tpu_custom_call.1} parent=1 // pred_check_branch
      %862 = sbr.rel (0) target = $region33
    $region32: #{tpu_custom_call.1} parent=1 // pred_region
      %s864 = ssub.s32 256, 256
      %865 = vsyncadd [#allocation4], %s864
      %s866 = sshll.u32 [#allocation3], 4
      %s867 = int_to_ptr.vmem [resolvable:$true] %s866
      %872 = dma.vmem_to_hbm [thread:$0]  %s867, 256, %s7, [#allocation4], 128, 128, 8
    $region33: #{tpu_custom_call.1} parent=1 // pred_fallthru
      _
    // Predicated region
    $region34: #{tpu_custom_call.1} parent=1 // pred_check
      _
    $region35: #{tpu_custom_call.1} parent=1 // pred_check_branch
      %874 = sbr.rel (0) target = $region37
    $region36: #{tpu_custom_call.1} parent=1 // pred_region
      %875 = dma.done [#allocation4], 256
    $region37: #{tpu_custom_call.1} parent=1 // pred_fallthru
      _
    %876 = vsyncpa [#allocation4], 1

</llo_original>
